<compile_context>
chip_gen: v6e
topology: v6e:2x2x1
jax: 0.10.0
libtpu: 0.0.40
codegen_flags: <defaults>
</compile_context>

<pallas_src>
import jax
import jax.numpy as jnp
from jax.experimental import pallas as pl
from jax.experimental.pallas import tpu as pltpu


def _affine(w_ref, x, b_ref):
    """w @ x + b in f32.  A tiny static contraction (K <= 8) is done as VPU
    broadcast-FMAs (avoids padding K=4 up to a full MXU tile); otherwise MXU."""
    w = w_ref[...]
    b = b_ref[...]
    k = w.shape[1]
    if k <= 8:
        acc = w[:, 0:1] * x[0:1, :] + b
        for kk in range(1, k):
            acc = acc + w[:, kk:kk + 1] * x[kk:kk + 1, :]
        return acc
    return jnp.dot(w, x, preferred_element_type=jnp.float32) + b


def odefunc_kernel(zt_ref, w1_ref, b1_ref, w2_ref, b2_ref, w3_ref, b3_ref, out_ref):
    """dz/dt = Linear -> tanh -> Linear -> tanh -> Linear, fused in VMEM.

    zt_ref : (dim, TILE_B) state tile, batch on the lane axis (lane-dense).
    w*_ref : (out, in) resident weights; b*_ref : (out, 1) resident biases.
    """
    zt = zt_ref[...].astype(jnp.float32)           # (dim,    TILE_B)
    h1 = jnp.tanh(_affine(w1_ref, zt, b1_ref))     # (hidden, TILE_B)  K=4 -> VPU
    h2 = jnp.tanh(_affine(w2_ref, h1, b2_ref))     # (hidden, TILE_B)  MXU
    out = _affine(w3_ref, h2, b3_ref)              # (dim,    TILE_B)  MXU
    out_ref[...] = out.astype(out_ref.dtype)


def _round_up(x, m):
    return ((x + m - 1) // m) * m


# Above this many (padded) batch lanes we split into exactly two tiles so the
# "parallel" grid axis lands one tile per TensorCore on v7x.  Below it, a
# single grid step is strictly better (per-step overhead dominates).
_LARGE_BATCH = 1024


def ode_func_lane_dense(zt, params):
    """RHS in kernel-native layout.

    zt: (dim, padded_batch) with padded_batch % 128 == 0, batch on the lane
    axis.  An ODE integrator should keep its state in this layout and call
    this function directly, paying the transpose/pad only at the boundary.
    """
    w1, b1, w2, b2, w3, b3 = params
    dim, padded = zt.shape
    hidden = w1.shape[0]
    assert padded % 128 == 0, "lane-dense batch must be a multiple of 128"

    if padded >= _LARGE_BATCH and padded % 256 == 0:
        tile_b = padded // 2      # 2 grid steps -> one tile per TC on v7x
    else:
        tile_b = padded           # single grid step; tiles are tiny vs. VMEM
    grid = padded // tile_b

    const = lambda i: (0, 0)      # same block every step -> resident in VMEM
    itemsize = jnp.dtype(zt.dtype).itemsize
    cost = pl.CostEstimate(
        flops=2 * padded * (dim * hidden + hidden * hidden + hidden * dim),
        transcendentals=2 * padded * hidden,
        bytes_accessed=itemsize * (2 * dim * padded + 2 * dim * hidden
                                   + hidden * hidden + 2 * hidden + dim),
    )

    return pl.pallas_call(
        odefunc_kernel,
        out_shape=jax.ShapeDtypeStruct((dim, padded), zt.dtype),
        grid_spec=pltpu.PrefetchScalarGridSpec(
            num_scalar_prefetch=0,
            grid=(grid,),
            in_specs=[
                pl.BlockSpec((dim, tile_b), lambda i: (0, i)),
                pl.BlockSpec((hidden, dim), const),
                pl.BlockSpec((hidden, 1), const),
                pl.BlockSpec((hidden, hidden), const),
                pl.BlockSpec((hidden, 1), const),
                pl.BlockSpec((dim, hidden), const),
                pl.BlockSpec((dim, 1), const),
            ],
            out_specs=pl.BlockSpec((dim, tile_b), lambda i: (0, i)),
        ),
        # Batch tiles are independent -> shard across TensorCores (v7x);
        # no-op on single-TC v5e/v6e.
        compiler_params=pltpu.CompilerParams(dimension_semantics=("parallel",)),
        cost_estimate=cost,
    )(zt, w1, b1, w2, b2, w3, b3)


@jax.jit
def ode_func(t, z, params):
    """JAX wrapper mirroring ODEFunc.forward(t, z); `t` is unused (as in PyTorch).

    z is (batch, dim) feature-last (PyTorch convention).  The transpose/pad/
    un-pad is boundary plumbing fused into one jitted program; for repeated RHS
    evaluations inside an integrator, call `ode_func_lane_dense` directly and
    keep the state in the lane-dense layout.
    """
    del t  # dynamics do not depend on t in this module
    batch, _ = z.shape
    # Minimal 128-lane padding; 256-align only when we will 2-way split (v7x).
    padded = _round_up(batch, 256 if batch >= _LARGE_BATCH else 128)
    zt = jnp.pad(z.T, ((0, 0), (0, padded - batch)))       # (dim, padded)
    out_t = ode_func_lane_dense(zt, params)
    return out_t[:, :batch].T


def init_params(key, dim, hidden_dim, dtype=jnp.float32):
    """nn.Linear default init U(-1/sqrt(fan_in), 1/sqrt(fan_in)).
    Weights stored PyTorch-native (out_features, in_features); biases (out, 1)."""
    ks = jax.random.split(key, 6)

    def linear(kw, kb, fan_in, fan_out):
        bound = float(fan_in) ** -0.5
        w = jax.random.uniform(kw, (fan_out, fan_in), dtype, -bound, bound)
        b = jax.random.uniform(kb, (fan_out, 1), dtype, -bound, bound)
        return w, b

    w1, b1 = linear(ks[0], ks[1], dim, hidden_dim)
    w2, b2 = linear(ks[2], ks[3], hidden_dim, hidden_dim)
    w3, b3 = linear(ks[4], ks[5], hidden_dim, dim)
    return (w1, b1, w2, b2, w3, b3)


def ode_func_ref(t, z, params):
    """Pure-JAX reference mirroring the PyTorch forward."""
    del t
    w1, b1, w2, b2, w3, b3 = params
    h1 = jnp.tanh(z @ w1.T + b1[:, 0])
    h2 = jnp.tanh(h1 @ w2.T + b2[:, 0])
    return h2 @ w3.T + b3[:, 0]


if __name__ == "__main__":
    dim, hidden_dim = 4, 32
    key = jax.random.PRNGKey(0)
    k_params, k0, k1, k2 = jax.random.split(key, 4)
    params = init_params(k_params, dim, hidden_dim)
    t = jnp.float32(0.0)  # unused by the dynamics, kept for signature parity

    # batch=8   : single 128-lane tile, heavy padding path.
    # batch=200 : non-multiple-of-128 pad + un-pad slice, still grid=1.
    # batch=1536: large-batch path -> two 768-wide tiles (one per TC on v7x).
    for batch, kz in ((8, k0), (200, k1), (1536, k2)):
        z = jax.random.normal(kz, (batch, dim), dtype=jnp.float32)
        out = jax.block_until_ready(ode_func(t, z, params))
        ref = ode_func_ref(t, z, params)
        assert out.shape == (batch, dim)
        assert jnp.allclose(out, ref, atol=1e-4, rtol=1e-4), f"mismatch at batch={batch}"

    print("KERNEL_OK")
</pallas_src>

<mosaic_0001>
module attributes {stable_mosaic.version = 11 : i64} {
  func.func @odefunc_kernel(%arg0: i32, %arg1: memref<4x128xf32, #tpu.memory_space<vmem>>, %arg2: memref<32x4xf32, #tpu.memory_space<vmem>>, %arg3: memref<32x1xf32, #tpu.memory_space<vmem>>, %arg4: memref<32x32xf32, #tpu.memory_space<vmem>>, %arg5: memref<32x1xf32, #tpu.memory_space<vmem>>, %arg6: memref<4x32xf32, #tpu.memory_space<vmem>>, %arg7: memref<4x1xf32, #tpu.memory_space<vmem>>, %arg8: memref<4x128xf32, #tpu.memory_space<vmem>>) attributes {dimension_semantics = [#tpu.dimension_semantics<parallel>], iteration_bounds = array<i64: 1>, scalar_prefetch = 0 : i64, scratch_operands = 0 : i64, tpu.core_type = #tpu.core_type<tc>, window_params = [{transform_indices = @transform_0, window_bounds = array<i64: 4, 128>}, {pipeline_mode = #tpu.pipeline_mode<synchronous>, transform_indices = @transform_1, window_bounds = array<i64: 32, 4>}, {pipeline_mode = #tpu.pipeline_mode<synchronous>, transform_indices = @transform_2, window_bounds = array<i64: 32, 1>}, {pipeline_mode = #tpu.pipeline_mode<synchronous>, transform_indices = @transform_3, window_bounds = array<i64: 32, 32>}, {pipeline_mode = #tpu.pipeline_mode<synchronous>, transform_indices = @transform_4, window_bounds = array<i64: 32, 1>}, {pipeline_mode = #tpu.pipeline_mode<synchronous>, transform_indices = @transform_5, window_bounds = array<i64: 4, 32>}, {pipeline_mode = #tpu.pipeline_mode<synchronous>, transform_indices = @transform_6, window_bounds = array<i64: 4, 1>}, {transform_indices = @transform_7, window_bounds = array<i64: 4, 128>}]} {
    %c0 = arith.constant 0 : index
    %c0_0 = arith.constant 0 : index
    %0 = vector.load %arg1[%c0, %c0_0] : memref<4x128xf32, #tpu.memory_space<vmem>>, vector<4x128xf32>
    %c0_1 = arith.constant 0 : index
    %c0_2 = arith.constant 0 : index
    %1 = vector.load %arg2[%c0_1, %c0_2] : memref<32x4xf32, #tpu.memory_space<vmem>>, vector<32x4xf32>
    %c0_3 = arith.constant 0 : index
    %c0_4 = arith.constant 0 : index
    %2 = vector.load %arg3[%c0_3, %c0_4] : memref<32x1xf32, #tpu.memory_space<vmem>>, vector<32x1xf32>
    %3 = vector.extract_strided_slice %1 {offsets = [0, 0], sizes = [32, 1], strides = [1, 1]} : vector<32x4xf32> to vector<32x1xf32>
    %4 = vector.extract_strided_slice %0 {offsets = [0, 0], sizes = [1, 128], strides = [1, 1]} : vector<4x128xf32> to vector<1x128xf32>
    %5 = vector.broadcast %3 : vector<32x1xf32> to vector<32x128xf32>
    %6 = vector.broadcast %4 : vector<1x128xf32> to vector<32x128xf32>
    %7 = arith.mulf %5, %6 : vector<32x128xf32>
    %8 = vector.broadcast %2 : vector<32x1xf32> to vector<32x128xf32>
    %9 = arith.addf %7, %8 : vector<32x128xf32>
    %10 = vector.extract_strided_slice %1 {offsets = [0, 1], sizes = [32, 1], strides = [1, 1]} : vector<32x4xf32> to vector<32x1xf32>
    %11 = vector.extract_strided_slice %0 {offsets = [1, 0], sizes = [1, 128], strides = [1, 1]} : vector<4x128xf32> to vector<1x128xf32>
    %12 = vector.broadcast %10 : vector<32x1xf32> to vector<32x128xf32>
    %13 = vector.broadcast %11 : vector<1x128xf32> to vector<32x128xf32>
    %14 = arith.mulf %12, %13 : vector<32x128xf32>
    %15 = arith.addf %9, %14 : vector<32x128xf32>
    %16 = vector.extract_strided_slice %1 {offsets = [0, 2], sizes = [32, 1], strides = [1, 1]} : vector<32x4xf32> to vector<32x1xf32>
    %17 = vector.extract_strided_slice %0 {offsets = [2, 0], sizes = [1, 128], strides = [1, 1]} : vector<4x128xf32> to vector<1x128xf32>
    %18 = vector.broadcast %16 : vector<32x1xf32> to vector<32x128xf32>
    %19 = vector.broadcast %17 : vector<1x128xf32> to vector<32x128xf32>
    %20 = arith.mulf %18, %19 : vector<32x128xf32>
    %21 = arith.addf %15, %20 : vector<32x128xf32>
    %22 = vector.extract_strided_slice %1 {offsets = [0, 3], sizes = [32, 1], strides = [1, 1]} : vector<32x4xf32> to vector<32x1xf32>
    %23 = vector.extract_strided_slice %0 {offsets = [3, 0], sizes = [1, 128], strides = [1, 1]} : vector<4x128xf32> to vector<1x128xf32>
    %24 = vector.broadcast %22 : vector<32x1xf32> to vector<32x128xf32>
    %25 = vector.broadcast %23 : vector<1x128xf32> to vector<32x128xf32>
    %26 = arith.mulf %24, %25 : vector<32x128xf32>
    %27 = arith.addf %21, %26 : vector<32x128xf32>
    %28 = math.tanh %27 : vector<32x128xf32>
    %c0_5 = arith.constant 0 : index
    %c0_6 = arith.constant 0 : index
    %29 = vector.load %arg4[%c0_5, %c0_6] : memref<32x32xf32, #tpu.memory_space<vmem>>, vector<32x32xf32>
    %c0_7 = arith.constant 0 : index
    %c0_8 = arith.constant 0 : index
    %30 = vector.load %arg5[%c0_7, %c0_8] : memref<32x1xf32, #tpu.memory_space<vmem>>, vector<32x1xf32>
    %cst = arith.constant dense<0.000000e+00> : vector<32x128xf32>
    %31 = tpu.matmul %29, %28, %cst {dimension_numbers = #tpu.dot_dimension_numbers<[1], [0], [0], [1], [0, 0, 1, 1], [], []>} : vector<32x32xf32>, vector<32x128xf32>, vector<32x128xf32> -> vector<32x128xf32>
    %32 = vector.broadcast %30 : vector<32x1xf32> to vector<32x128xf32>
    %33 = arith.addf %31, %32 : vector<32x128xf32>
    %34 = math.tanh %33 : vector<32x128xf32>
    %c0_9 = arith.constant 0 : index
    %c0_10 = arith.constant 0 : index
    %35 = vector.load %arg6[%c0_9, %c0_10] : memref<4x32xf32, #tpu.memory_space<vmem>>, vector<4x32xf32>
    %c0_11 = arith.constant 0 : index
    %c0_12 = arith.constant 0 : index
    %36 = vector.load %arg7[%c0_11, %c0_12] : memref<4x1xf32, #tpu.memory_space<vmem>>, vector<4x1xf32>
    %cst_13 = arith.constant dense<0.000000e+00> : vector<4x128xf32>
    %37 = tpu.matmul %35, %34, %cst_13 {dimension_numbers = #tpu.dot_dimension_numbers<[1], [0], [0], [1], [0, 0, 1, 1], [], []>} : vector<4x32xf32>, vector<32x128xf32>, vector<4x128xf32> -> vector<4x128xf32>
    %38 = vector.broadcast %36 : vector<4x1xf32> to vector<4x128xf32>
    %39 = arith.addf %37, %38 : vector<4x128xf32>
    %c0_14 = arith.constant 0 : index
    %c0_15 = arith.constant 0 : index
    %40 = vector.load %arg8[%c0_14, %c0_15] : memref<4x128xf32, #tpu.memory_space<vmem>>, vector<4x128xf32>
    tpu.vector_store %arg8[%c0_14, %c0_15], %39 {strides = array<i32>} : memref<4x128xf32, #tpu.memory_space<vmem>>, vector<4x128xf32>,
    return
  }
  func.func @transform_0(%arg0: i32) -> (i32, i32) {
    %c0_i32 = arith.constant 0 : i32
    %c0_i32_0 = arith.constant 0 : i32
    return %c0_i32, %arg0 : i32, i32
  }
  func.func @transform_1(%arg0: i32) -> (i32, i32) {
    %c0_i32 = arith.constant 0 : i32
    %c0_i32_0 = arith.constant 0 : i32
    %c0_i32_1 = arith.constant 0 : i32
    return %c0_i32, %c0_i32_0 : i32, i32
  }
  func.func @transform_2(%arg0: i32) -> (i32, i32) {
    %c0_i32 = arith.constant 0 : i32
    %c0_i32_0 = arith.constant 0 : i32
    %c0_i32_1 = arith.constant 0 : i32
    return %c0_i32, %c0_i32_0 : i32, i32
  }
  func.func @transform_3(%arg0: i32) -> (i32, i32) {
    %c0_i32 = arith.constant 0 : i32
    %c0_i32_0 = arith.constant 0 : i32
    %c0_i32_1 = arith.constant 0 : i32
    return %c0_i32, %c0_i32_0 : i32, i32
  }
  func.func @transform_4(%arg0: i32) -> (i32, i32) {
    %c0_i32 = arith.constant 0 : i32
    %c0_i32_0 = arith.constant 0 : i32
    %c0_i32_1 = arith.constant 0 : i32
    return %c0_i32, %c0_i32_0 : i32, i32
  }
  func.func @transform_5(%arg0: i32) -> (i32, i32) {
    %c0_i32 = arith.constant 0 : i32
    %c0_i32_0 = arith.constant 0 : i32
    %c0_i32_1 = arith.constant 0 : i32
    return %c0_i32, %c0_i32_0 : i32, i32
  }
  func.func @transform_6(%arg0: i32) -> (i32, i32) {
    %c0_i32 = arith.constant 0 : i32
    %c0_i32_0 = arith.constant 0 : i32
    %c0_i32_1 = arith.constant 0 : i32
    return %c0_i32, %c0_i32_0 : i32, i32
  }
  func.func @transform_7(%arg0: i32) -> (i32, i32) {
    %c0_i32 = arith.constant 0 : i32
    %c0_i32_0 = arith.constant 0 : i32
    return %c0_i32, %arg0 : i32, i32
  }
}

</mosaic_0001>

<llo_original>
// kernel: ode_func.1
$region0: #{ode_func.1}
  #allocation0 [shape = 'u32[]', space=smem, size = 0x4, offset = 0x4, fixed_abs, tag = 'smem constant byte address 0x4 - core index']
  #allocation1 [shape = 'u32[144,128]{1,0:T(1,128)}', space=vmem, size = 0x12000, scoped, tag = 'internal scratch']
  %s0 = inlined_call_operand.vmem [shape: f32[4,128], index: 0, kind: input, shape index: {}]
  %s1 = inlined_call_operand.vmem [shape: f32[32,4], index: 1, kind: input, shape index: {}]
  %s2 = inlined_call_operand.vmem [shape: f32[32,1], index: 2, kind: input, shape index: {}]
  %s3 = inlined_call_operand.vmem [shape: f32[32,32], index: 3, kind: input, shape index: {}]
  %s4 = inlined_call_operand.vmem [shape: f32[32,1], index: 4, kind: input, shape index: {}]
  %s5 = inlined_call_operand.vmem [shape: f32[4,32], index: 5, kind: input, shape index: {}]
  %s6 = inlined_call_operand.vmem [shape: f32[4,1], index: 6, kind: input, shape index: {}]
  %s7 = inlined_call_operand.vmem [shape: f32[4,128], index: 7, kind: output, shape index: {}]
  %s8 = sld [smem:[#allocation0]]
  $region38: #{ode_func.1} parent=0
    _
  %s10 = ssub.s32 1, %s8
  %s11 = scalar_select 0, %s10, %s8
  // Predicated region
  $region2: #{ode_func.1} parent=0 // pred_check
    _
  $region3: #{ode_func.1} parent=0 // pred_check_branch
    %13 = sbr.rel (0) target = $region5
  $region4: #{ode_func.1} parent=0 // pred_region
    _
  $region5: #{ode_func.1} parent=0 // pred_fallthru
    _
  // Predicated region
  $region6: #{ode_func.1} parent=0 // pred_check
    _
  $region7: #{ode_func.1} parent=0 // pred_check_branch
    %15 = sbr.rel (0) target = $region9
  $region8: #{ode_func.1} parent=0 // pred_region
    _
  $region9: #{ode_func.1} parent=0 // pred_fallthru
    _
  // Predicated region
  $region10: #{ode_func.1} parent=0 // pred_check
    _
  $region11: #{ode_func.1} parent=0 // pred_check_branch
    %17 = sbr.rel (0) target = $region13
  $region12: #{ode_func.1} parent=0 // pred_region
    _
  $region13: #{ode_func.1} parent=0 // pred_fallthru
    _
  // Predicated region
  $region14: #{ode_func.1} parent=0 // pred_check
    _
  $region15: #{ode_func.1} parent=0 // pred_check_branch
    %19 = sbr.rel (0) target = $region17
  $region16: #{ode_func.1} parent=0 // pred_region
    _
  $region17: #{ode_func.1} parent=0 // pred_fallthru
    _
  // Predicated region
  $region18: #{ode_func.1} parent=0 // pred_check
    _
  $region19: #{ode_func.1} parent=0 // pred_check_branch
    %21 = sbr.rel (0) target = $region21
  $region20: #{ode_func.1} parent=0 // pred_region
    _
  $region21: #{ode_func.1} parent=0 // pred_fallthru
    _
  // Predicated region
  $region22: #{ode_func.1} parent=0 // pred_check
    _
  $region23: #{ode_func.1} parent=0 // pred_check_branch
    %23 = sbr.rel (0) target = $region25
  $region24: #{ode_func.1} parent=0 // pred_region
    _
  $region25: #{ode_func.1} parent=0 // pred_fallthru
    _
  // Predicated region
  $region26: #{ode_func.1} parent=0 // pred_check
    _
  $region27: #{ode_func.1} parent=0 // pred_check_branch
    %25 = sbr.rel (0) target = $region29
  $region28: #{ode_func.1} parent=0 // pred_region
    _
  $region29: #{ode_func.1} parent=0 // pred_fallthru
    _
  %v26 = vld [vmem:[%s0] sm:$0xf]
  %v27 = vld [vmem:[%s1] sm:$0xff]
  %v28 = vld [vmem:[%s1 + $0x8] sm:$0xff]
  %v29 = vld [vmem:[%s1 + $0x10] sm:$0xff]
  %v30 = vld [vmem:[%s1 + $0x18] sm:$0xff]
  %v31 = vld [vmem:[%s2] sm:$0xff]
  %v32 = vld [vmem:[%s2 + $0x8] sm:$0xff]
  %v33 = vld [vmem:[%s2 + $0x10] sm:$0xff]
  %v34 = vld [vmem:[%s2 + $0x18] sm:$0xff]
  %36 = vset.pattern.permute.xlu0 0
  %37 = vperm.xlu0 %36, %v27
  %v38 = vpop.permute.xlu0 %37
  %41 = vset.pattern.permute.xlu0 0
  %42 = vperm.xlu0 %41, %v28
  %v43 = vpop.permute.xlu0 %42
  %46 = vset.pattern.permute.xlu0 0
  %47 = vperm.xlu0 %46, %v29
  %v48 = vpop.permute.xlu0 %47
  %51 = vset.pattern.permute.xlu0 0
  %52 = vperm.xlu0 %51, %v30
  %v53 = vpop.permute.xlu0 %52
  %v55 = vlaneseq
  %v56 = vshrl.u32 %v55, 7
  %v57 = vsub.s32 0, %v56
  %v58 = vrot.slane %v26, %v57
  %v59 = vmul.f32 %v38, %v58
  %v60 = vmul.f32 %v43, %v58
  %v61 = vmul.f32 %v48, %v58
  %v62 = vmul.f32 %v53, %v58
  %64 = vset.pattern.permute.xlu0 0
  %65 = vperm.xlu0 %64, %v31
  %v66 = vpop.permute.xlu0 %65
  %69 = vset.pattern.permute.xlu0 0
  %70 = vperm.xlu0 %69, %v32
  %v71 = vpop.permute.xlu0 %70
  %74 = vset.pattern.permute.xlu0 0
  %75 = vperm.xlu0 %74, %v33
  %v76 = vpop.permute.xlu0 %75
  %79 = vset.pattern.permute.xlu0 0
  %80 = vperm.xlu0 %79, %v34
  %v81 = vpop.permute.xlu0 %80
  %v83 = vadd.f32 %v59, %v66
  %v84 = vadd.f32 %v60, %v71
  %v85 = vadd.f32 %v61, %v76
  %v86 = vadd.f32 %v62, %v81
  %87 = vset.pattern.permute.xlu0 1
  %88 = vperm.xlu0 %87, %v27
  %v89 = vpop.permute.xlu0 %88
  %91 = vset.pattern.permute.xlu0 1
  %92 = vperm.xlu0 %91, %v28
  %v93 = vpop.permute.xlu0 %92
  %95 = vset.pattern.permute.xlu0 1
  %96 = vperm.xlu0 %95, %v29
  %v97 = vpop.permute.xlu0 %96
  %99 = vset.pattern.permute.xlu0 1
  %100 = vperm.xlu0 %99, %v30
  %v101 = vpop.permute.xlu0 %100
  %v103 = vlaneseq
  %v104 = vshrl.u32 %v103, 7
  %v105 = vsub.s32 1, %v104
  %v106 = vrot.slane %v26, %v105
  %v107 = vmul.f32 %v89, %v106
  %v108 = vmul.f32 %v93, %v106
  %v109 = vmul.f32 %v97, %v106
  %v110 = vmul.f32 %v101, %v106
  %v111 = vadd.f32 %v83, %v107
  %v112 = vadd.f32 %v84, %v108
  %v113 = vadd.f32 %v85, %v109
  %v114 = vadd.f32 %v86, %v110
  %115 = vset.pattern.permute.xlu0 2
  %116 = vperm.xlu0 %115, %v27
  %v117 = vpop.permute.xlu0 %116
  %119 = vset.pattern.permute.xlu0 2
  %120 = vperm.xlu0 %119, %v28
  %v121 = vpop.permute.xlu0 %120
  %123 = vset.pattern.permute.xlu0 2
  %124 = vperm.xlu0 %123, %v29
  %v125 = vpop.permute.xlu0 %124
  %127 = vset.pattern.permute.xlu0 2
  %128 = vperm.xlu0 %127, %v30
  %v129 = vpop.permute.xlu0 %128
  %v131 = vlaneseq
  %v132 = vshrl.u32 %v131, 7
  %v133 = vsub.s32 2, %v132
  %v134 = vrot.slane %v26, %v133
  %v135 = vmul.f32 %v117, %v134
  %v136 = vmul.f32 %v121, %v134
  %v137 = vmul.f32 %v125, %v134
  %v138 = vmul.f32 %v129, %v134
  %v139 = vadd.f32 %v111, %v135
  %v140 = vadd.f32 %v112, %v136
  %v141 = vadd.f32 %v113, %v137
  %v142 = vadd.f32 %v114, %v138
  %143 = vset.pattern.permute.xlu0 3
  %144 = vperm.xlu0 %143, %v27
  %v145 = vpop.permute.xlu0 %144
  %147 = vset.pattern.permute.xlu0 3
  %148 = vperm.xlu0 %147, %v28
  %v149 = vpop.permute.xlu0 %148
  %151 = vset.pattern.permute.xlu0 3
  %152 = vperm.xlu0 %151, %v29
  %v153 = vpop.permute.xlu0 %152
  %155 = vset.pattern.permute.xlu0 3
  %156 = vperm.xlu0 %155, %v30
  %v157 = vpop.permute.xlu0 %156
  %v159 = vlaneseq
  %v160 = vshrl.u32 %v159, 7
  %v161 = vsub.s32 3, %v160
  %v162 = vrot.slane %v26, %v161
  %v163 = vmul.f32 %v145, %v162
  %v164 = vmul.f32 %v149, %v162
  %v165 = vmul.f32 %v153, %v162
  %v166 = vmul.f32 %v157, %v162
  %v167 = vadd.f32 %v139, %v163
  %v168 = vadd.f32 %v140, %v164
  %v169 = vadd.f32 %v141, %v165
  %v170 = vadd.f32 %v142, %v166
  %v171 = vtanh.pop %v167
  %v172 = vtanh.pop %v168
  %v173 = vtanh.pop %v169
  %v174 = vtanh.pop %v170
  %v175 = vld [vmem:[%s3] sm:$0xff]
  %v176 = vld [vmem:[%s3 + $0x8] sm:$0xff]
  %v177 = vld [vmem:[%s3 + $0x10] sm:$0xff]
  %v178 = vld [vmem:[%s3 + $0x18] sm:$0xff]
  %v179 = vld [vmem:[%s4] sm:$0xff]
  %v180 = vld [vmem:[%s4 + $0x8] sm:$0xff]
  %v181 = vld [vmem:[%s4 + $0x10] sm:$0xff]
  %v182 = vld [vmem:[%s4 + $0x18] sm:$0xff]
  %184 = vset.pattern.permute.xlu0 0
  %185 = vperm.xlu0 %184, %v179
  %v186 = vpop.permute.xlu0 %185
  %189 = vset.pattern.permute.xlu0 0
  %190 = vperm.xlu0 %189, %v180
  %v191 = vpop.permute.xlu0 %190
  %194 = vset.pattern.permute.xlu0 0
  %195 = vperm.xlu0 %194, %v181
  %v196 = vpop.permute.xlu0 %195
  %199 = vset.pattern.permute.xlu0 0
  %200 = vperm.xlu0 %199, %v182
  %v201 = vpop.permute.xlu0 %200
  %vm203 = vcmask 261120
  %v205 = vsel %vm203, %v175, 0
  %v208 = vsel %vm203, %v176, 0
  %v211 = vsel %vm203, %v177, 0
  %v214 = vsel %vm203, %v178, 0
  %216 = vmatprep.subr.mxu0 0.0
  %217 = vmatpush1.msra.mxu0 0.0
  %218 = vmatprep.subr.mxu0 0.0
  %219 = vmatpush1.msra.mxu0 0.0
  %220 = vmatprep.subr.mxu0 0.0
  %221 = vmatpush1.msra.mxu0 0.0
  %222 = vmatprep.subr.mxu0 0.0
  %223 = vmatpush1.msra.mxu0 0.0
  %224 = vmatprep.subr.mxu0 0.0
  %225 = vmatpush1.msra.mxu0 0.0
  %226 = vmatprep.subr.mxu0 0.0
  %227 = vmatpush1.msra.mxu0 0.0
  %228 = vmatprep.subr.mxu0 0.0
  %229 = vmatpush1.msra.mxu0 0.0
  %230 = vmatprep.subr.mxu0 0.0
  %231 = vmatpush1.msra.mxu0 0.0
  %232 = vmatprep.subr.mxu0 0.0
  %233 = vmatpush1.msra.mxu0 0.0
  %234 = vmatprep.subr.mxu0 0.0
  %235 = vmatpush1.msra.mxu0 0.0
  %236 = vmatprep.subr.mxu0 0.0
  %237 = vmatpush1.msra.mxu0 0.0
  %238 = vmatprep.subr.mxu0 0.0
  %239 = vmatpush1.msra.mxu0 0.0
  %240 = vmatprep.subr.mxu0 0.0
  %241 = vmatpush1.msra.mxu0 %v174
  %242 = vmatprep.subr.mxu0 0.0
  %243 = vmatpush1.msra.mxu0 %v173
  %244 = vmatprep.subr.mxu0 0.0
  %245 = vmatpush1.msra.mxu0 %v172
  %246 = vmatprep.subr.mxu0 0.0
  %247 = vmatpush1.msra.mxu0 %v171
  %248 = vmatprep.subr.mxu0 0.0
  %249 = vmatpush2.msra.mxu0 0.0
  %250 = vmatprep.subr.mxu0 0.0
  %251 = vmatpush2.msra.mxu0 0.0
  %252 = vmatprep.subr.mxu0 0.0
  %253 = vmatpush2.msra.mxu0 0.0
  %254 = vmatprep.subr.mxu0 0.0
  %255 = vmatpush2.msra.mxu0 0.0
  %256 = vmatprep.subr.mxu0 0.0
  %257 = vmatpush2.msra.mxu0 0.0
  %258 = vmatprep.subr.mxu0 0.0
  %259 = vmatpush2.msra.mxu0 0.0
  %260 = vmatprep.subr.mxu0 0.0
  %261 = vmatpush2.msra.mxu0 0.0
  %262 = vmatprep.subr.mxu0 0.0
  %263 = vmatpush2.msra.mxu0 0.0
  %264 = vmatprep.subr.mxu0 0.0
  %265 = vmatpush2.msra.mxu0 0.0
  %266 = vmatprep.subr.mxu0 0.0
  %267 = vmatpush2.msra.mxu0 0.0
  %268 = vmatprep.subr.mxu0 0.0
  %269 = vmatpush2.msra.mxu0 0.0
  %270 = vmatprep.subr.mxu0 0.0
  %271 = vmatpush2.msra.mxu0 0.0
  %272 = vmatprep.subr.mxu0 0.0
  %273 = vmatpush2.msra.mxu0 0.0
  %274 = vmatprep.subr.mxu0 0.0
  %275 = vmatpush2.msra.mxu0 0.0
  %276 = vmatprep.subr.mxu0 0.0
  %277 = vmatpush2.msra.mxu0 0.0
  %278 = vmatprep.subr.mxu0 0.0
  %279 = vmatpush2.msra.mxu0 0.0
  %280 = vmatprep.mubr.f32.mxu0 0.0
  %281 = vmatmul.mubr.f32.gmra.mxu0 %v205
  %v282 = vpop.f32.mrf.mxu0
  %v283 = vadd.f32 %v186, %v282
  %v284 = vpop.f32.mrf.mxu0
  %285 = vmatprep.mubr.f32.mxu0 0.0
  %286 = vmatmul.mubr.f32.gmra.mxu0 %v208
  %v287 = vpop.f32.mrf.mxu0
  %v288 = vadd.f32 %v191, %v287
  %v289 = vpop.f32.mrf.mxu0
  %290 = vmatprep.mubr.f32.mxu0 0.0
  %291 = vmatmul.mubr.f32.gmra.mxu0 %v211
  %v292 = vpop.f32.mrf.mxu0
  %v293 = vadd.f32 %v196, %v292
  %v294 = vpop.f32.mrf.mxu0
  %295 = vmatprep.mubr.f32.mxu0 0.0
  %296 = vmatmul.mubr.f32.gmra.mxu0 %v214
  %v297 = vpop.f32.mrf.mxu0
  %v298 = vadd.f32 %v201, %v297
  %v299 = vpop.f32.mrf.mxu0
  %300 = vdwg.mxu0
  %v301 = vtanh.pop %v283
  %v302 = vtanh.pop %v288
  %v303 = vtanh.pop %v293
  %v304 = vtanh.pop %v298
  %v305 = vld [vmem:[%s5] sm:$0xf]
  %v306 = vld [vmem:[%s6] sm:$0xf]
  %308 = vset.pattern.permute.xlu0 0
  %309 = vperm.xlu0 %308, %v306
  %v310 = vpop.permute.xlu0 %309
  %v313 = vsel %vm203, %v305, 0
  %315 = vmatprep.subr.mxu0 0.0
  %316 = vmatpush1.msra.mxu0 0.0
  %317 = vmatprep.subr.mxu0 0.0
  %318 = vmatpush1.msra.mxu0 0.0
  %319 = vmatprep.subr.mxu0 0.0
  %320 = vmatpush1.msra.mxu0 0.0
  %321 = vmatprep.subr.mxu0 0.0
  %322 = vmatpush1.msra.mxu0 0.0
  %323 = vmatprep.subr.mxu0 0.0
  %324 = vmatpush1.msra.mxu0 0.0
  %325 = vmatprep.subr.mxu0 0.0
  %326 = vmatpush1.msra.mxu0 0.0
  %327 = vmatprep.subr.mxu0 0.0
  %328 = vmatpush1.msra.mxu0 0.0
  %329 = vmatprep.subr.mxu0 0.0
  %330 = vmatpush1.msra.mxu0 0.0
  %331 = vmatprep.subr.mxu0 0.0
  %332 = vmatpush1.msra.mxu0 0.0
  %333 = vmatprep.subr.mxu0 0.0
  %334 = vmatpush1.msra.mxu0 0.0
  %335 = vmatprep.subr.mxu0 0.0
  %336 = vmatpush1.msra.mxu0 0.0
  %337 = vmatprep.subr.mxu0 0.0
  %338 = vmatpush1.msra.mxu0 0.0
  %339 = vmatprep.subr.mxu0 0.0
  %340 = vmatpush1.msra.mxu0 %v304
  %341 = vmatprep.subr.mxu0 0.0
  %342 = vmatpush1.msra.mxu0 %v303
  %343 = vmatprep.subr.mxu0 0.0
  %344 = vmatpush1.msra.mxu0 %v302
  %345 = vmatprep.subr.mxu0 0.0
  %346 = vmatpush1.msra.mxu0 %v301
  %347 = vmatprep.subr.mxu0 0.0
  %348 = vmatpush2.msra.mxu0 0.0
  %349 = vmatprep.subr.mxu0 0.0
  %350 = vmatpush2.msra.mxu0 0.0
  %351 = vmatprep.subr.mxu0 0.0
  %352 = vmatpush2.msra.mxu0 0.0
  %353 = vmatprep.subr.mxu0 0.0
  %354 = vmatpush2.msra.mxu0 0.0
  %355 = vmatprep.subr.mxu0 0.0
  %356 = vmatpush2.msra.mxu0 0.0
  %357 = vmatprep.subr.mxu0 0.0
  %358 = vmatpush2.msra.mxu0 0.0
  %359 = vmatprep.subr.mxu0 0.0
  %360 = vmatpush2.msra.mxu0 0.0
  %361 = vmatprep.subr.mxu0 0.0
  %362 = vmatpush2.msra.mxu0 0.0
  %363 = vmatprep.subr.mxu0 0.0
  %364 = vmatpush2.msra.mxu0 0.0
  %365 = vmatprep.subr.mxu0 0.0
  %366 = vmatpush2.msra.mxu0 0.0
  %367 = vmatprep.subr.mxu0 0.0
  %368 = vmatpush2.msra.mxu0 0.0
  %369 = vmatprep.subr.mxu0 0.0
  %370 = vmatpush2.msra.mxu0 0.0
  %371 = vmatprep.subr.mxu0 0.0
  %372 = vmatpush2.msra.mxu0 0.0
  %373 = vmatprep.subr.mxu0 0.0
  %374 = vmatpush2.msra.mxu0 0.0
  %375 = vmatprep.subr.mxu0 0.0
  %376 = vmatpush2.msra.mxu0 0.0
  %377 = vmatprep.subr.mxu0 0.0
  %378 = vmatpush2.msra.mxu0 0.0
  %379 = vmatprep.mubr.f32.mxu0 0.0
  %380 = vmatmul.mubr.f32.gmra.mxu0 %v313
  %v381 = vpop.f32.mrf.mxu0
  %v382 = vadd.f32 %v310, %v381
  %v383 = vpop.f32.mrf.mxu0
  %384 = vdwg.mxu0
  %385 = vst [vmem:[%s7] sm:$0xf] %v382
  // Predicated region
  $region30: #{ode_func.1} parent=0 // pred_check
    _
  $region31: #{ode_func.1} parent=0 // pred_check_branch
    %387 = sbr.rel (0) target = $region33
  $region32: #{ode_func.1} parent=0 // pred_region
    _
  $region33: #{ode_func.1} parent=0 // pred_fallthru
    _
  // Predicated region
  $region34: #{ode_func.1} parent=0 // pred_check
    _
  $region35: #{ode_func.1} parent=0 // pred_check_branch
    %389 = sbr.rel (0) target = $region37
  $region36: #{ode_func.1} parent=0 // pred_region
    _
  $region37: #{ode_func.1} parent=0 // pred_fallthru
    _

</llo_original>
